<compile_context>
chip_gen: v7x
topology: tpu7x:2x2x1
jax: 0.10.0
libtpu: 0.0.40
codegen_flags: <defaults>
</compile_context>

<pallas_src>
import functools

import jax
import jax.numpy as jnp
from jax.experimental import pallas as pl
from jax.experimental.pallas import tpu as pltpu


# ---------------------------------------------------------------------------
# Kernel
# ---------------------------------------------------------------------------
def _vector_hull_kernel(x_ref, a_ref, w0_ref, b0_ref, w1_ref, wx_ref, b1_ref,
                        ainv_ref, o_ref, *, petals, out_dim):
    """One (block_n, D) tile of tokens; fused per-petal params resident in VMEM."""
    cdt = x_ref.dtype                    # MXU operand dtype (bf16 or f32)
    x = x_ref[...]                       # (tN, D)

    # Fused AtlasProjector: (tN, D) @ (D, P*D) -> (tN, P*D), lane dense.
    xp = jnp.dot(x, a_ref[...], preferred_element_type=jnp.float32)

    # Fused ICNN hidden: block-diagonal W0 keeps petals independent.
    # Biases + softplus stay in f32 (v5e has no bf16 VPU/EUP path).
    h = jax.nn.softplus(
        jnp.dot(xp.astype(cdt), w0_ref[...], preferred_element_type=jnp.float32)
        + b0_ref[...])

    # Fused ICNN output + skip from raw x, then exact inversion via
    # block-diagonal A^{-1} (invert=True path).
    f = (jnp.dot(h.astype(cdt), w1_ref[...], preferred_element_type=jnp.float32)
         + jnp.dot(x, wx_ref[...], preferred_element_type=jnp.float32)
         + b1_ref[...])
    f = jnp.dot(f.astype(cdt), ainv_ref[...], preferred_element_type=jnp.float32)

    # Pairwise group means over petals (g, (g+1)%P), streamed hull max.
    D = out_dim
    hull = None
    for g in range(petals):
        gp1 = (g + 1) % petals
        m = 0.5 * (f[:, g * D:(g + 1) * D] + f[:, gp1 * D:(gp1 + 1) * D])
        hull = m if hull is None else jnp.maximum(hull, m)

    # TODO(synk): output last dim D=32 < 128 lanes -> masked store; acceptable
    # since writeback is small relative to compute at these sizes.
    o_ref[...] = hull.astype(o_ref.dtype)
    # TODO(synk): invert=False branch (adds `shifts` per group) not wired in;
    # default invert=True + zero shifts make it dead code.


# ---------------------------------------------------------------------------
# Weight fusion helpers (run once per call; constant-folded under jit)
# ---------------------------------------------------------------------------
def _concat_out(w):
    """(P, D, E) -> (D, P*E): out[d, p*E+e] = w[p, d, e]."""
    P, D, E = w.shape
    return jnp.transpose(w, (1, 0, 2)).reshape(D, P * E)


def _block_diag(w):
    """(P, A, B) -> (P*A, P*B) block-diagonal."""
    P, A, B = w.shape
    eye = jnp.eye(P, dtype=w.dtype)
    return jnp.einsum('pq,pab->paqb', eye, w).reshape(P * A, P * B)


def _round_up(n, m):
    return -(-n // m) * m


# ---------------------------------------------------------------------------
# Wrapper
# ---------------------------------------------------------------------------
def vector_hull_forward(x, params, *, petals, block_n=512,
                        compute_dtype=jnp.bfloat16):
    """x: (B, S, D) float32  ->  (B, S, D) float32."""
    B, S, D = x.shape
    N = B * S
    A, Ainv, W0, b0, W1, Wx, b1 = params
    H = W0.shape[-1]
    P = petals

    # Fuse petals into lane-dense / block-diagonal weights.
    a_cat = _concat_out(A).astype(compute_dtype)        # (D, P*D)
    wx_cat = _concat_out(Wx).astype(compute_dtype)      # (D, P*D)
    w0_bd = _block_diag(W0).astype(compute_dtype)       # (P*D, P*H)
    w1_bd = _block_diag(W1).astype(compute_dtype)       # (P*H, P*D)
    ainv_bd = _block_diag(Ainv).astype(compute_dtype)   # (P*D, P*D)
    b0_cat = b0.reshape(1, P * H).astype(jnp.float32)   # (1, P*H)
    b1_cat = b1.reshape(1, P * D).astype(jnp.float32)   # (1, P*D)

    # Token tile: large to amortize per-step overhead, multiple of 8 (f32
    # sublanes), capped so the grid has >=2 steps (v7x megacore) and pad N.
    block_n = max(8, (block_n // 8) * 8)
    block_n = min(block_n, max(8, _round_up(-(-N // 2), 8)))
    n_pad = _round_up(N, block_n)

    x_flat = x.reshape(N, D).astype(compute_dtype)
    if n_pad != N:
        x_flat = jnp.pad(x_flat, ((0, n_pad - N), (0, 0)))

    # Explicit VMEM budget: double-buffered x/out tiles + (double-buffered)
    # resident fused params + headroom for intermediates.
    itemsize = jnp.dtype(compute_dtype).itemsize
    param_bytes = ((a_cat.size + wx_cat.size + w0_bd.size + w1_bd.size
                    + ainv_bd.size) * itemsize
                   + (b0_cat.size + b1_cat.size) * 4)
    tile_bytes = block_n * D * (itemsize + jnp.dtype(x.dtype).itemsize)
    vmem_limit = int(2 * param_bytes + 2 * tile_bytes + (8 << 20))

    full2 = lambda i: (0, 0)
    out = pl.pallas_call(
        functools.partial(_vector_hull_kernel, petals=P, out_dim=D),
        out_shape=jax.ShapeDtypeStruct((n_pad, D), x.dtype),
        grid_spec=pl.GridSpec(
            grid=(n_pad // block_n,),
            in_specs=[
                pl.BlockSpec((block_n, D), lambda i: (i, 0)),   # x tokens
                pl.BlockSpec((D, P * D), full2),                # A (concat)
                pl.BlockSpec((P * D, P * H), full2),            # W0 (block-diag)
                pl.BlockSpec((1, P * H), full2),                # b0 (fused)
                pl.BlockSpec((P * H, P * D), full2),            # W1 (block-diag)
                pl.BlockSpec((D, P * D), full2),                # Wx (concat skip)
                pl.BlockSpec((1, P * D), full2),                # b1 (fused)
                pl.BlockSpec((P * D, P * D), full2),            # A^{-1} (block-diag)
            ],
            out_specs=pl.BlockSpec((block_n, D), lambda i: (i, 0)),
        ),
        compiler_params=pltpu.CompilerParams(
            dimension_semantics=("parallel",),
            vmem_limit_bytes=vmem_limit),
    )(x_flat, a_cat, w0_bd, b0_cat, w1_bd, wx_cat, b1_cat, ainv_bd)
    return out[:N].reshape(B, S, D)


# ---------------------------------------------------------------------------
# Synthetic parameters + pure-JAX reference
# ---------------------------------------------------------------------------
def init_params(key, D, P, H):
    """Deterministic synthetic parameters (no checkpoint)."""
    ks = jax.random.split(key, 6)
    A = jnp.eye(D, dtype=jnp.float32)[None] + 0.1 * jax.random.normal(
        ks[0], (P, D, D), dtype=jnp.float32)      # well-conditioned, invertible
    Ainv = jnp.linalg.inv(A).astype(jnp.float32)
    W0 = 0.1 * jax.random.normal(ks[1], (P, D, H), dtype=jnp.float32)
    b0 = 0.1 * jax.random.normal(ks[2], (P, 1, H), dtype=jnp.float32)
    W1 = 0.1 * jax.random.normal(ks[3], (P, H, D), dtype=jnp.float32)
    Wx = 0.1 * jax.random.normal(ks[4], (P, D, D), dtype=jnp.float32)
    b1 = 0.1 * jax.random.normal(ks[5], (P, 1, D), dtype=jnp.float32)
    return (A.astype(jnp.float32), Ainv, W0, b0, W1, Wx, b1)


def vector_hull_reference(x, params, *, petals):
    """Pure-JAX reference mirroring the PyTorch forward literally (f32)."""
    A, Ainv, W0, b0, W1, Wx, b1 = params
    B, S, D = x.shape
    N = B * S
    xf = x.reshape(N, D)
    x_proj = jnp.einsum('nd,pde->pne', xf, A)                 # (P, N, D)
    h = jax.nn.softplus(jnp.einsum('pnd,pdh->pnh', x_proj, W0) + b0)
    f = (jnp.einsum('pnh,phd->pnd', h, W1)
         + jnp.einsum('nd,pde->pne', xf, Wx) + b1)
    f = jnp.transpose(f, (1, 0, 2))                           # (N, P, D)
    f = jnp.einsum('npd,pde->npe', f, Ainv)                   # exact inversion
    flat_inds = jnp.array(
        [j for g in range(petals) for j in (g, (g + 1) % petals)],
        dtype=jnp.int32)
    selected = jnp.take(f, flat_inds, axis=1).reshape(N, petals, 2, D)
    means = selected.mean(axis=2)
    hull = means.max(axis=1)
    return hull.reshape(B, S, D)


if __name__ == "__main__":
    B, S, D, P, H = 2, 8, 32, 4, 32
    key = jax.random.PRNGKey(0)
    kx, kp = jax.random.split(key)
    x = jax.random.normal(kx, (B, S, D), dtype=jnp.float32)
    params = init_params(kp, D, P, H)

    ref = vector_hull_reference(x, params, petals=P)

    # f32 path: tight check against the pure-JAX reference.
    out_f32 = jax.block_until_ready(
        vector_hull_forward(x, params, petals=P, compute_dtype=jnp.float32))
    assert out_f32.shape == (B, S, D)
    assert jnp.allclose(out_f32, ref, atol=1e-4, rtol=1e-4)

    # bf16 MXU path (default for production): loose check vs f32 reference.
    out_bf16 = jax.block_until_ready(vector_hull_forward(x, params, petals=P))
    assert out_bf16.shape == (B, S, D)
    assert jnp.allclose(out_bf16, ref, atol=1e-1, rtol=1e-1)

    print("KERNEL_OK")
</pallas_src>

<mosaic_0001>
module attributes {stable_mosaic.version = 11 : i64} {
  func.func @_vector_hull_kernel(%arg0: i32, %arg1: memref<8x32xf32, #tpu.memory_space<vmem>>, %arg2: memref<32x128xf32, #tpu.memory_space<vmem>>, %arg3: memref<128x128xf32, #tpu.memory_space<vmem>>, %arg4: memref<1x128xf32, #tpu.memory_space<vmem>>, %arg5: memref<128x128xf32, #tpu.memory_space<vmem>>, %arg6: memref<32x128xf32, #tpu.memory_space<vmem>>, %arg7: memref<1x128xf32, #tpu.memory_space<vmem>>, %arg8: memref<128x128xf32, #tpu.memory_space<vmem>>, %arg9: memref<8x32xf32, #tpu.memory_space<vmem>>) attributes {dimension_semantics = [#tpu.dimension_semantics<parallel>], iteration_bounds = array<i64: 2>, scalar_prefetch = 0 : i64, scratch_operands = 0 : i64, tpu.core_type = #tpu.core_type<tc>, window_params = [{transform_indices = @transform_0, window_bounds = array<i64: 8, 32>}, {pipeline_mode = #tpu.pipeline_mode<synchronous>, transform_indices = @transform_1, window_bounds = array<i64: 32, 128>}, {pipeline_mode = #tpu.pipeline_mode<synchronous>, transform_indices = @transform_2, window_bounds = array<i64: 128, 128>}, {pipeline_mode = #tpu.pipeline_mode<synchronous>, transform_indices = @transform_3, window_bounds = array<i64: 1, 128>}, {pipeline_mode = #tpu.pipeline_mode<synchronous>, transform_indices = @transform_4, window_bounds = array<i64: 128, 128>}, {pipeline_mode = #tpu.pipeline_mode<synchronous>, transform_indices = @transform_5, window_bounds = array<i64: 32, 128>}, {pipeline_mode = #tpu.pipeline_mode<synchronous>, transform_indices = @transform_6, window_bounds = array<i64: 1, 128>}, {pipeline_mode = #tpu.pipeline_mode<synchronous>, transform_indices = @transform_7, window_bounds = array<i64: 128, 128>}, {transform_indices = @transform_8, window_bounds = array<i64: 8, 32>}]} {
    %c0 = arith.constant 0 : index
    %c0_0 = arith.constant 0 : index
    %0 = vector.load %arg1[%c0, %c0_0] : memref<8x32xf32, #tpu.memory_space<vmem>>, vector<8x32xf32>
    %c0_1 = arith.constant 0 : index
    %c0_2 = arith.constant 0 : index
    %1 = vector.load %arg2[%c0_1, %c0_2] : memref<32x128xf32, #tpu.memory_space<vmem>>, vector<32x128xf32>
    %cst = arith.constant dense<0.000000e+00> : vector<8x128xf32>
    %2 = tpu.matmul %0, %1, %cst {dimension_numbers = #tpu.dot_dimension_numbers<[1], [0], [0], [1], [0, 0, 1, 1], [], []>} : vector<8x32xf32>, vector<32x128xf32>, vector<8x128xf32> -> vector<8x128xf32>
    %c0_3 = arith.constant 0 : index
    %c0_4 = arith.constant 0 : index
    %3 = vector.load %arg3[%c0_3, %c0_4] : memref<128x128xf32, #tpu.memory_space<vmem>>, vector<128x128xf32>
    %cst_5 = arith.constant dense<0.000000e+00> : vector<8x128xf32>
    %4 = tpu.matmul %2, %3, %cst_5 {dimension_numbers = #tpu.dot_dimension_numbers<[1], [0], [0], [1], [0, 0, 1, 1], [], []>} : vector<8x128xf32>, vector<128x128xf32>, vector<8x128xf32> -> vector<8x128xf32>
    %c0_6 = arith.constant 0 : index
    %c0_7 = arith.constant 0 : index
    %5 = vector.load %arg4[%c0_6, %c0_7] : memref<1x128xf32, #tpu.memory_space<vmem>>, vector<1x128xf32>
    %6 = vector.broadcast %5 : vector<1x128xf32> to vector<8x128xf32>
    %7 = arith.addf %4, %6 : vector<8x128xf32>
    %cst_8 = arith.constant 0.000000e+00 : f32
    %8 = vector.broadcast %cst_8 : f32 to vector<8x128xf32>
    %9 = arith.maximumf %7, %8 : vector<8x128xf32>
    %10 = vector.broadcast %cst_8 : f32 to vector<8x128xf32>
    %11 = arith.subf %7, %10 : vector<8x128xf32>
    %12 = arith.cmpf one, %11, %11 : vector<8x128xf32>
    %13 = vector.broadcast %cst_8 : f32 to vector<8x128xf32>
    %14 = arith.addf %7, %13 : vector<8x128xf32>
    %15 = math.absf %11 : vector<8x128xf32>
    %cst_9 = arith.constant 0.000000e+00 : f32
    %16 = vector.broadcast %cst_9 : f32 to vector<8x128xf32>
    %17 = arith.subf %16, %15 : vector<8x128xf32>
    %18 = math.exp %17 : vector<8x128xf32>
    %19 = math.log1p %18 : vector<8x128xf32>
    %20 = arith.addf %9, %19 : vector<8x128xf32>
    %21 = arith.select %12, %14, %20 : vector<8x128xi1>, vector<8x128xf32>
    %c0_10 = arith.constant 0 : index
    %c0_11 = arith.constant 0 : index
    %22 = vector.load %arg5[%c0_10, %c0_11] : memref<128x128xf32, #tpu.memory_space<vmem>>, vector<128x128xf32>
    %cst_12 = arith.constant dense<0.000000e+00> : vector<8x128xf32>
    %23 = tpu.matmul %21, %22, %cst_12 {dimension_numbers = #tpu.dot_dimension_numbers<[1], [0], [0], [1], [0, 0, 1, 1], [], []>} : vector<8x128xf32>, vector<128x128xf32>, vector<8x128xf32> -> vector<8x128xf32>
    %c0_13 = arith.constant 0 : index
    %c0_14 = arith.constant 0 : index
    %24 = vector.load %arg6[%c0_13, %c0_14] : memref<32x128xf32, #tpu.memory_space<vmem>>, vector<32x128xf32>
    %cst_15 = arith.constant dense<0.000000e+00> : vector<8x128xf32>
    %25 = tpu.matmul %0, %24, %cst_15 {dimension_numbers = #tpu.dot_dimension_numbers<[1], [0], [0], [1], [0, 0, 1, 1], [], []>} : vector<8x32xf32>, vector<32x128xf32>, vector<8x128xf32> -> vector<8x128xf32>
    %26 = arith.addf %23, %25 : vector<8x128xf32>
    %c0_16 = arith.constant 0 : index
    %c0_17 = arith.constant 0 : index
    %27 = vector.load %arg7[%c0_16, %c0_17] : memref<1x128xf32, #tpu.memory_space<vmem>>, vector<1x128xf32>
    %28 = vector.broadcast %27 : vector<1x128xf32> to vector<8x128xf32>
    %29 = arith.addf %26, %28 : vector<8x128xf32>
    %c0_18 = arith.constant 0 : index
    %c0_19 = arith.constant 0 : index
    %30 = vector.load %arg8[%c0_18, %c0_19] : memref<128x128xf32, #tpu.memory_space<vmem>>, vector<128x128xf32>
    %cst_20 = arith.constant dense<0.000000e+00> : vector<8x128xf32>
    %31 = tpu.matmul %29, %30, %cst_20 {dimension_numbers = #tpu.dot_dimension_numbers<[1], [0], [0], [1], [0, 0, 1, 1], [], []>} : vector<8x128xf32>, vector<128x128xf32>, vector<8x128xf32> -> vector<8x128xf32>
    %32 = vector.extract_strided_slice %31 {offsets = [0, 0], sizes = [8, 32], strides = [1, 1]} : vector<8x128xf32> to vector<8x32xf32>
    %33 = vector.extract_strided_slice %31 {offsets = [0, 32], sizes = [8, 32], strides = [1, 1]} : vector<8x128xf32> to vector<8x32xf32>
    %34 = arith.addf %32, %33 : vector<8x32xf32>
    %cst_21 = arith.constant 5.000000e-01 : f32
    %35 = vector.broadcast %cst_21 : f32 to vector<8x32xf32>
    %36 = arith.mulf %35, %34 : vector<8x32xf32>
    %37 = vector.extract_strided_slice %31 {offsets = [0, 32], sizes = [8, 32], strides = [1, 1]} : vector<8x128xf32> to vector<8x32xf32>
    %38 = vector.extract_strided_slice %31 {offsets = [0, 64], sizes = [8, 32], strides = [1, 1]} : vector<8x128xf32> to vector<8x32xf32>
    %39 = arith.addf %37, %38 : vector<8x32xf32>
    %cst_22 = arith.constant 5.000000e-01 : f32
    %40 = vector.broadcast %cst_22 : f32 to vector<8x32xf32>
    %41 = arith.mulf %40, %39 : vector<8x32xf32>
    %42 = arith.maximumf %36, %41 : vector<8x32xf32>
    %43 = vector.extract_strided_slice %31 {offsets = [0, 64], sizes = [8, 32], strides = [1, 1]} : vector<8x128xf32> to vector<8x32xf32>
    %44 = vector.extract_strided_slice %31 {offsets = [0, 96], sizes = [8, 32], strides = [1, 1]} : vector<8x128xf32> to vector<8x32xf32>
    %45 = arith.addf %43, %44 : vector<8x32xf32>
    %cst_23 = arith.constant 5.000000e-01 : f32
    %46 = vector.broadcast %cst_23 : f32 to vector<8x32xf32>
    %47 = arith.mulf %46, %45 : vector<8x32xf32>
    %48 = arith.maximumf %42, %47 : vector<8x32xf32>
    %49 = vector.extract_strided_slice %31 {offsets = [0, 96], sizes = [8, 32], strides = [1, 1]} : vector<8x128xf32> to vector<8x32xf32>
    %50 = vector.extract_strided_slice %31 {offsets = [0, 0], sizes = [8, 32], strides = [1, 1]} : vector<8x128xf32> to vector<8x32xf32>
    %51 = arith.addf %49, %50 : vector<8x32xf32>
    %cst_24 = arith.constant 5.000000e-01 : f32
    %52 = vector.broadcast %cst_24 : f32 to vector<8x32xf32>
    %53 = arith.mulf %52, %51 : vector<8x32xf32>
    %54 = arith.maximumf %48, %53 : vector<8x32xf32>
    %c0_25 = arith.constant 0 : index
    %c0_26 = arith.constant 0 : index
    %55 = vector.load %arg9[%c0_25, %c0_26] : memref<8x32xf32, #tpu.memory_space<vmem>>, vector<8x32xf32>
    tpu.vector_store %arg9[%c0_25, %c0_26], %54 {strides = array<i32>} : memref<8x32xf32, #tpu.memory_space<vmem>>, vector<8x32xf32>,
    return
  }
  func.func @transform_0(%arg0: i32) -> (i32, i32) {
    %c0_i32 = arith.constant 0 : i32
    %c0_i32_0 = arith.constant 0 : i32
    return %arg0, %c0_i32 : i32, i32
  }
  func.func @transform_1(%arg0: i32) -> (i32, i32) {
    %c0_i32 = arith.constant 0 : i32
    %c0_i32_0 = arith.constant 0 : i32
    %c0_i32_1 = arith.constant 0 : i32
    return %c0_i32, %c0_i32_0 : i32, i32
  }
  func.func @transform_2(%arg0: i32) -> (i32, i32) {
    %c0_i32 = arith.constant 0 : i32
    %c0_i32_0 = arith.constant 0 : i32
    %c0_i32_1 = arith.constant 0 : i32
    return %c0_i32, %c0_i32_0 : i32, i32
  }
  func.func @transform_3(%arg0: i32) -> (i32, i32) {
    %c0_i32 = arith.constant 0 : i32
    %c0_i32_0 = arith.constant 0 : i32
    %c0_i32_1 = arith.constant 0 : i32
    return %c0_i32, %c0_i32_0 : i32, i32
  }
  func.func @transform_4(%arg0: i32) -> (i32, i32) {
    %c0_i32 = arith.constant 0 : i32
    %c0_i32_0 = arith.constant 0 : i32
    %c0_i32_1 = arith.constant 0 : i32
    return %c0_i32, %c0_i32_0 : i32, i32
  }
  func.func @transform_5(%arg0: i32) -> (i32, i32) {
    %c0_i32 = arith.constant 0 : i32
    %c0_i32_0 = arith.constant 0 : i32
    %c0_i32_1 = arith.constant 0 : i32
    return %c0_i32, %c0_i32_0 : i32, i32
  }
  func.func @transform_6(%arg0: i32) -> (i32, i32) {
    %c0_i32 = arith.constant 0 : i32
    %c0_i32_0 = arith.constant 0 : i32
    %c0_i32_1 = arith.constant 0 : i32
    return %c0_i32, %c0_i32_0 : i32, i32
  }
  func.func @transform_7(%arg0: i32) -> (i32, i32) {
    %c0_i32 = arith.constant 0 : i32
    %c0_i32_0 = arith.constant 0 : i32
    %c0_i32_1 = arith.constant 0 : i32
    return %c0_i32, %c0_i32_0 : i32, i32
  }
  func.func @transform_8(%arg0: i32) -> (i32, i32) {
    %c0_i32 = arith.constant 0 : i32
    %c0_i32_0 = arith.constant 0 : i32
    return %arg0, %c0_i32 : i32, i32
  }
}

</mosaic_0001>

<llo_original>
// kernel: tpu_custom_call.1
$region0: #{tpu_custom_call.1}
  #allocation0 [shape = 'u32[]', space=smem, size = 0x4, offset = 0x4, fixed_abs, tag = 'smem constant byte address 0x4 - core index']
  #allocation1 [shape = 'u32[144,128]{1,0:T(1,128)}', space=vmem, size = 0x12000, scoped, tag = 'internal scratch']
  %s0 = inlined_call_operand.hbm [shape: f32[16,32], index: 0, kind: input, shape index: {}]
  %s1 = inlined_call_operand.hbm [shape: f32[32,128], index: 1, kind: input, shape index: {}]
  %s2 = inlined_call_operand.hbm [shape: f32[128,128], index: 2, kind: input, shape index: {}]
  %s3 = inlined_call_operand.vmem [shape: f32[1,128], index: 3, kind: input, shape index: {}]
  %s4 = inlined_call_operand.hbm [shape: f32[128,128], index: 4, kind: input, shape index: {}]
  %s5 = inlined_call_operand.hbm [shape: f32[32,128], index: 5, kind: input, shape index: {}]
  %s6 = inlined_call_operand.vmem [shape: f32[1,128], index: 6, kind: input, shape index: {}]
  %s7 = inlined_call_operand.hbm [shape: f32[128,128], index: 7, kind: input, shape index: {}]
  %s8 = inlined_call_operand.hbm [shape: f32[16,32], index: 8, kind: output, shape index: {}]
  %s9 = sld [smem:[#allocation0]]
  $region89: #{tpu_custom_call.1} parent=0
    _
  %s11 = ssub.s32 1, %s9
  %s12 = scalar_select 0, %s11, %s9
  $region1: #{tpu_custom_call.1} parent=0
    #allocation2 [shape = 'u8[8192]{0}', space=vmem, size = 0x2000, scoped, tag = 'input window, operand 0']
    #allocation3 [shape = 's32[2]{0}', space=sflag, size = 0x8, scoped, tag = 'scoped memory for tpu_custom_call.1']
    #allocation4 [shape = 's32[2]{0}', space=sflag, size = 0x8, scoped, tag = 'scoped memory for tpu_custom_call.1']
    #allocation5 [shape = 'u8[16384]{0}', space=vmem, size = 0x4000, scoped, tag = 'input window, operand 1, single buffered']
    #allocation6 [shape = 's32[1]{0}', space=sflag, size = 0x4, scoped, tag = 'scoped memory for tpu_custom_call.1']
    #allocation7 [shape = 'u8[65536]{0}', space=vmem, size = 0x10000, scoped, tag = 'input window, operand 2, single buffered']
    #allocation8 [shape = 'u8[65536]{0}', space=vmem, size = 0x10000, scoped, tag = 'input window, operand 4, single buffered']
    #allocation9 [shape = 's32[1]{0}', space=sflag, size = 0x4, scoped, tag = 'scoped memory for tpu_custom_call.1']
    #allocation10 [shape = 'u8[16384]{0}', space=vmem, size = 0x4000, scoped, tag = 'input window, operand 5, single buffered']
    #allocation11 [shape = 'u8[65536]{0}', space=vmem, size = 0x10000, scoped, tag = 'input window, operand 7, single buffered']
    #allocation12 [shape = 's32[1]{0}', space=sflag, size = 0x4, scoped, tag = 'scoped memory for tpu_custom_call.1']
    #allocation13 [shape = 'u8[8192]{0}', space=vmem, size = 0x2000, scoped, tag = 'output window, operand 0']
    %13 = vsyncpa [#allocation3], 0
    %s14 = scalar_lea.sflag [#allocation3], 1
    %15 = vsyncpa %s14, 0
    %16 = vsyncpa [#allocation6], 0
    %17 = vsyncpa [#allocation9], 0
    %18 = vsyncpa [#allocation12], 0
    %19 = vsyncpa [#allocation4], 0
    %s20 = scalar_lea.sflag [#allocation4], 1
    %21 = vsyncpa %s20, 0
    loop: start=0, step=1, limit=4
    $region2: #{tpu_custom_call.1} parent=1 // loop_pre_header
      _
    $region3: #{tpu_custom_call.1} parent=1 // loop_header
      %s23 = sphi 0, %s27
      %p24 = scmp.ge.s32.totalorder %s23, 4
      %s33 = sphi 0, %s35
      %s36 = sphi 0, %s33
      %s37 = sphi 0, %s36
      %s53 = sphi 0, %s37
      %s57 = sphi 0, %s57
      %s59 = sphi 0, %s57
      %s60 = sphi 0, %s59
      %s74 = sphi 0, %s60
      %s78 = sphi 0, %s78
      %s80 = sphi 0, %s78
      %s81 = sphi 0, %s80
      %s95 = sphi 0, %s81
      %s99 = sphi 0, %s99
      %s101 = sphi 0, %s99
      %s102 = sphi 0, %s101
      %s116 = sphi 0, %s102
      %s120 = sphi 0, %s120
      %s122 = sphi 0, %s120
      %s123 = sphi 0, %s122
      %s137 = sphi 0, %s123
      %s141 = sphi 0, %s141
      %s143 = sphi 0, %s141
      %s144 = sphi 0, %s143
      %s158 = sphi 0, %s144
      %s162 = sphi 0, %s162
      %s164 = sphi 0, %s162
      %s165 = sphi 0, %s164
      %s179 = sphi 0, %s165
      %s183 = sphi 0, %s183
      %s185 = sphi 0, %s183
      %s186 = sphi 0, %s185
      %s200 = sphi 0, %s186
      %s206 = sphi 0, %s208
      %s209 = sphi 0, %s206
      %s210 = sphi 0, %s209
      %s226 = sphi 0, %s210
    $region4: #{tpu_custom_call.1} parent=1 // loop_header_branch
      %26 = sbr.rel (%p24) target = $region8
    $region5: #{tpu_custom_call.1} parent=1 // loop_body
      %s28 = ssub.s32 %s23, 1
      %s29 = ssub.s32 %s23, 2
      %s30 = sadd.s32 %s23, 1
      %s31 = ssub.s32 %s23, %s30
      %p32 = scmp.eq.s32.totalorder %s31, 0
      %s34 = sadd.s32 %s33, 1
      %s35 = scalar_select %p32, %s33, %s34
      %p38 = pneg %p32
      %p39 = scmp.eq.s32.totalorder %s23, 1
      %p40 = por %p38, %p39
      %p41 = scmp.ne.s32.totalorder %s33, %s36
      %p42 = scmp.eq.s32.totalorder %s23, 0
      %p43 = por %p41, %p42
      %p44 = scmp.ne.s32.totalorder %s33, %s36
      %p45 = scmp.eq.s32.totalorder %s28, 1
      %p46 = por %p44, %p45
      %p47 = scmp.ne.s32.totalorder %s36, %s37
      %p48 = scmp.eq.s32.totalorder %s28, 0
      %p49 = por %p47, %p48
      %p50 = scmp.ne.s32.totalorder %s36, %s37
      %p51 = scmp.eq.s32.totalorder %s29, 1
      %p52 = por %p50, %p51
      %p54 = scmp.ne.s32.totalorder %s37, %s53
      %p55 = scmp.eq.s32.totalorder %s29, 0
      %p56 = por %p54, %p55
      %s58 = sadd.s32 %s57, 1
      %p61 = scmp.eq.s32.totalorder %s23, 1
      %p62 = scmp.ne.s32.totalorder %s57, %s59
      %p63 = scmp.eq.s32.totalorder %s23, 0
      %p64 = por %p62, %p63
      %p65 = scmp.ne.s32.totalorder %s57, %s59
      %p66 = scmp.eq.s32.totalorder %s28, 1
      %p67 = por %p65, %p66
      %p68 = scmp.ne.s32.totalorder %s59, %s60
      %p69 = scmp.eq.s32.totalorder %s28, 0
      %p70 = por %p68, %p69
      %p71 = scmp.ne.s32.totalorder %s59, %s60
      %p72 = scmp.eq.s32.totalorder %s29, 1
      %p73 = por %p71, %p72
      %p75 = scmp.ne.s32.totalorder %s60, %s74
      %p76 = scmp.eq.s32.totalorder %s29, 0
      %p77 = por %p75, %p76
      %s79 = sadd.s32 %s78, 1
      %p82 = scmp.eq.s32.totalorder %s23, 1
      %p83 = scmp.ne.s32.totalorder %s78, %s80
      %p84 = scmp.eq.s32.totalorder %s23, 0
      %p85 = por %p83, %p84
      %p86 = scmp.ne.s32.totalorder %s78, %s80
      %p87 = scmp.eq.s32.totalorder %s28, 1
      %p88 = por %p86, %p87
      %p89 = scmp.ne.s32.totalorder %s80, %s81
      %p90 = scmp.eq.s32.totalorder %s28, 0
      %p91 = por %p89, %p90
      %p92 = scmp.ne.s32.totalorder %s80, %s81
      %p93 = scmp.eq.s32.totalorder %s29, 1
      %p94 = por %p92, %p93
      %p96 = scmp.ne.s32.totalorder %s81, %s95
      %p97 = scmp.eq.s32.totalorder %s29, 0
      %p98 = por %p96, %p97
      %s100 = sadd.s32 %s99, 1
      %p103 = scmp.eq.s32.totalorder %s23, 1
      %p104 = scmp.ne.s32.totalorder %s99, %s101
      %p105 = scmp.eq.s32.totalorder %s23, 0
      %p106 = por %p104, %p105
      %p107 = scmp.ne.s32.totalorder %s99, %s101
      %p108 = scmp.eq.s32.totalorder %s28, 1
      %p109 = por %p107, %p108
      %p110 = scmp.ne.s32.totalorder %s101, %s102
      %p111 = scmp.eq.s32.totalorder %s28, 0
      %p112 = por %p110, %p111
      %p113 = scmp.ne.s32.totalorder %s101, %s102
      %p114 = scmp.eq.s32.totalorder %s29, 1
      %p115 = por %p113, %p114
      %p117 = scmp.ne.s32.totalorder %s102, %s116
      %p118 = scmp.eq.s32.totalorder %s29, 0
      %p119 = por %p117, %p118
      %s121 = sadd.s32 %s120, 1
      %p124 = scmp.eq.s32.totalorder %s23, 1
      %p125 = scmp.ne.s32.totalorder %s120, %s122
      %p126 = scmp.eq.s32.totalorder %s23, 0
      %p127 = por %p125, %p126
      %p128 = scmp.ne.s32.totalorder %s120, %s122
      %p129 = scmp.eq.s32.totalorder %s28, 1
      %p130 = por %p128, %p129
      %p131 = scmp.ne.s32.totalorder %s122, %s123
      %p132 = scmp.eq.s32.totalorder %s28, 0
      %p133 = por %p131, %p132
      %p134 = scmp.ne.s32.totalorder %s122, %s123
      %p135 = scmp.eq.s32.totalorder %s29, 1
      %p136 = por %p134, %p135
      %p138 = scmp.ne.s32.totalorder %s123, %s137
      %p139 = scmp.eq.s32.totalorder %s29, 0
      %p140 = por %p138, %p139
      %s142 = sadd.s32 %s141, 1
      %p145 = scmp.eq.s32.totalorder %s23, 1
      %p146 = scmp.ne.s32.totalorder %s141, %s143
      %p147 = scmp.eq.s32.totalorder %s23, 0
      %p148 = por %p146, %p147
      %p149 = scmp.ne.s32.totalorder %s141, %s143
      %p150 = scmp.eq.s32.totalorder %s28, 1
      %p151 = por %p149, %p150
      %p152 = scmp.ne.s32.totalorder %s143, %s144
      %p153 = scmp.eq.s32.totalorder %s28, 0
      %p154 = por %p152, %p153
      %p155 = scmp.ne.s32.totalorder %s143, %s144
      %p156 = scmp.eq.s32.totalorder %s29, 1
      %p157 = por %p155, %p156
      %p159 = scmp.ne.s32.totalorder %s144, %s158
      %p160 = scmp.eq.s32.totalorder %s29, 0
      %p161 = por %p159, %p160
      %s163 = sadd.s32 %s162, 1
      %p166 = scmp.eq.s32.totalorder %s23, 1
      %p167 = scmp.ne.s32.totalorder %s162, %s164
      %p168 = scmp.eq.s32.totalorder %s23, 0
      %p169 = por %p167, %p168
      %p170 = scmp.ne.s32.totalorder %s162, %s164
      %p171 = scmp.eq.s32.totalorder %s28, 1
      %p172 = por %p170, %p171
      %p173 = scmp.ne.s32.totalorder %s164, %s165
      %p174 = scmp.eq.s32.totalorder %s28, 0
      %p175 = por %p173, %p174
      %p176 = scmp.ne.s32.totalorder %s164, %s165
      %p177 = scmp.eq.s32.totalorder %s29, 1
      %p178 = por %p176, %p177
      %p180 = scmp.ne.s32.totalorder %s165, %s179
      %p181 = scmp.eq.s32.totalorder %s29, 0
      %p182 = por %p180, %p181
      %s184 = sadd.s32 %s183, 1
      %p187 = scmp.eq.s32.totalorder %s23, 1
      %p188 = scmp.ne.s32.totalorder %s183, %s185
      %p189 = scmp.eq.s32.totalorder %s23, 0
      %p190 = por %p188, %p189
      %p191 = scmp.ne.s32.totalorder %s183, %s185
      %p192 = scmp.eq.s32.totalorder %s28, 1
      %p193 = por %p191, %p192
      %p194 = scmp.ne.s32.totalorder %s185, %s186
      %p195 = scmp.eq.s32.totalorder %s28, 0
      %p196 = por %p194, %p195
      %p197 = scmp.ne.s32.totalorder %s185, %s186
      %p198 = scmp.eq.s32.totalorder %s29, 1
      %p199 = por %p197, %p198
      %p201 = scmp.ne.s32.totalorder %s186, %s200
      %p202 = scmp.eq.s32.totalorder %s29, 0
      %p203 = por %p201, %p202
      %s204 = ssub.s32 %s23, %s30
      %p205 = scmp.eq.s32.totalorder %s204, 0
      %s207 = sadd.s32 %s206, 1
      %s208 = scalar_select %p205, %s206, %s207
      %p211 = pneg %p205
      %p212 = scmp.eq.s32.totalorder %s23, 1
      %p213 = por %p211, %p212
      %p214 = scmp.ne.s32.totalorder %s206, %s209
      %p215 = scmp.eq.s32.totalorder %s23, 0
      %p216 = por %p214, %p215
      %p217 = scmp.ne.s32.totalorder %s206, %s209
      %p218 = scmp.eq.s32.totalorder %s28, 1
      %p219 = por %p217, %p218
      %p220 = scmp.ne.s32.totalorder %s209, %s210
      %p221 = scmp.eq.s32.totalorder %s28, 0
      %p222 = por %p220, %p221
      %p223 = scmp.ne.s32.totalorder %s209, %s210
      %p224 = scmp.eq.s32.totalorder %s29, 1
      %p225 = por %p223, %p224
      %p227 = scmp.ne.s32.totalorder %s210, %s226
      %p228 = scmp.eq.s32.totalorder %s29, 0
      %p229 = por %p227, %p228
      %p230 = scmp.le.s32.totalorder 1, %s23
      %p231 = scmp.lt.s32.totalorder %s23, 3
      %p232 = pnand %p230, %p231
      %p233 = pneg %p232
      // Predicated region
      $region9: #{tpu_custom_call.1} parent=5 // pred_check
        _
      $region10: #{tpu_custom_call.1} parent=5 // pred_check_branch
        %235 = sbr.rel (%p232) target = $region12
      $region11: #{tpu_custom_call.1} parent=5 // pred_region
        %s236 = ssub.s32 %s23, 1
        // Predicated region
        $region13: #{tpu_custom_call.1} parent=11 // pred_check
          %p237 = pneg %p70
        $region14: #{tpu_custom_call.1} parent=11 // pred_check_branch
          %239 = sbr.rel (%p237) target = $region16
        $region15: #{tpu_custom_call.1} parent=11 // pred_region
          %s241 = ssub.s32 512, 512
          %242 = vsyncadd [#allocation6], %s241
          %s243 = sshll.u32 [#allocation5], 4
          %s244 = int_to_ptr.vmem [resolvable:$true] %s243
          %249 = dma.hbm_to_vmem [thread:$0]  %s1, 512, %s244, [#allocation6], 128, 128, 8
        $region16: #{tpu_custom_call.1} parent=11 // pred_fallthru
          _
        // Predicated region
        $region17: #{tpu_custom_call.1} parent=11 // pred_check
          %p250 = pneg %p91
        $region18: #{tpu_custom_call.1} parent=11 // pred_check_branch
          %252 = sbr.rel (%p250) target = $region20
        $region19: #{tpu_custom_call.1} parent=11 // pred_region
          %s254 = ssub.s32 2048, 2048
          %255 = vsyncadd [#allocation6], %s254
          %s256 = sshll.u32 [#allocation7], 4
          %s257 = int_to_ptr.vmem [resolvable:$true] %s256
          %262 = dma.hbm_to_vmem [thread:$0]  %s2, 2048, %s257, [#allocation6], 128, 128, 8
        $region20: #{tpu_custom_call.1} parent=11 // pred_fallthru
          _
        // Predicated region
        $region21: #{tpu_custom_call.1} parent=11 // pred_check
          %p263 = pneg %p112
        $region22: #{tpu_custom_call.1} parent=11 // pred_check_branch
          %265 = sbr.rel (%p263) target = $region24
        $region23: #{tpu_custom_call.1} parent=11 // pred_region
          _
        $region24: #{tpu_custom_call.1} parent=11 // pred_fallthru
          _
        // Predicated region
        $region25: #{tpu_custom_call.1} parent=11 // pred_check
          %p266 = pneg %p133
        $region26: #{tpu_custom_call.1} parent=11 // pred_check_branch
          %268 = sbr.rel (%p266) target = $region28
        $region27: #{tpu_custom_call.1} parent=11 // pred_region
          %s270 = ssub.s32 2048, 2048
          %271 = vsyncadd [#allocation9], %s270
          %s272 = sshll.u32 [#allocation8], 4
          %s273 = int_to_ptr.vmem [resolvable:$true] %s272
          %278 = dma.hbm_to_vmem [thread:$0]  %s4, 2048, %s273, [#allocation9], 128, 128, 8
        $region28: #{tpu_custom_call.1} parent=11 // pred_fallthru
          _
        // Predicated region
        $region29: #{tpu_custom_call.1} parent=11 // pred_check
          %p279 = pneg %p154
        $region30: #{tpu_custom_call.1} parent=11 // pred_check_branch
          %281 = sbr.rel (%p279) target = $region32
        $region31: #{tpu_custom_call.1} parent=11 // pred_region
          %s283 = ssub.s32 512, 512
          %284 = vsyncadd [#allocation9], %s283
          %s285 = sshll.u32 [#allocation10], 4
          %s286 = int_to_ptr.vmem [resolvable:$true] %s285
          %291 = dma.hbm_to_vmem [thread:$0]  %s5, 512, %s286, [#allocation9], 128, 128, 8
        $region32: #{tpu_custom_call.1} parent=11 // pred_fallthru
          _
        // Predicated region
        $region33: #{tpu_custom_call.1} parent=11 // pred_check
          %p292 = pneg %p175
        $region34: #{tpu_custom_call.1} parent=11 // pred_check_branch
          %294 = sbr.rel (%p292) target = $region36
        $region35: #{tpu_custom_call.1} parent=11 // pred_region
          _
        $region36: #{tpu_custom_call.1} parent=11 // pred_fallthru
          _
        // Predicated region
        $region37: #{tpu_custom_call.1} parent=11 // pred_check
          %p295 = pneg %p196
        $region38: #{tpu_custom_call.1} parent=11 // pred_check_branch
          %297 = sbr.rel (%p295) target = $region40
        $region39: #{tpu_custom_call.1} parent=11 // pred_region
          %s299 = ssub.s32 2048, 2048
          %300 = vsyncadd [#allocation12], %s299
          %s301 = sshll.u32 [#allocation11], 4
          %s302 = int_to_ptr.vmem [resolvable:$true] %s301
          %307 = dma.hbm_to_vmem [thread:$0]  %s7, 2048, %s302, [#allocation12], 128, 128, 8
        $region40: #{tpu_custom_call.1} parent=11 // pred_fallthru
          _
      $region12: #{tpu_custom_call.1} parent=5 // pred_fallthru
        _
      %p308 = scmp.lt.s32.totalorder %s23, 2
      // Predicated region
      $region41: #{tpu_custom_call.1} parent=5 // pred_check
        %p309 = pneg %p308
      $region42: #{tpu_custom_call.1} parent=5 // pred_check_branch
        %311 = sbr.rel (%p309) target = $region44
      $region43: #{tpu_custom_call.1} parent=5 // pred_region
        // Predicated region
        $region45: #{tpu_custom_call.1} parent=43 // pred_check
          %p312 = pneg %p43
        $region46: #{tpu_custom_call.1} parent=43 // pred_check_branch
          %314 = sbr.rel (%p312) target = $region48
        $region47: #{tpu_custom_call.1} parent=43 // pred_region
          %s315 = sand.u32 %s33, 1
          %s316 = scalar_lea.sflag [#allocation3], %s315
          %s317 = sand.u32 %s33, 1
          %s318 = smul.addr %s317, 8
          %s319 = scalar_lea.vmem [#allocation2], %s318
          %s321 = ssub.s32 128, 128
          %322 = vsyncadd %s316, %s321
          %s323 = smul.addr %s23, 128
          %s324 = scalar_lea.hbm %s0, %s323
          %s326 = sshll.u32 %s319, 4
          %s327 = int_to_ptr.vmem [resolvable:$true] %s326
          %329 = dma.hbm_to_vmem [thread:$0]  %s324, 128, %s327, %s316
        $region48: #{tpu_custom_call.1} parent=43 // pred_fallthru
          _
      $region44: #{tpu_custom_call.1} parent=5 // pred_fallthru
        _
      %p330 = scmp.le.s32.totalorder 1, %s23
      %p331 = scmp.lt.s32.totalorder %s23, 3
      %p332 = pnand %p330, %p331
      %p333 = pneg %p332
      // Predicated region
      $region49: #{tpu_custom_call.1} parent=5 // pred_check
        _
      $region50: #{tpu_custom_call.1} parent=5 // pred_check_branch
        %335 = sbr.rel (%p332) target = $region52
      $region51: #{tpu_custom_call.1} parent=5 // pred_region
        %s336 = ssub.s32 %s23, 1
        %s337 = sand.u32 %s36, 1
        %s338 = scalar_lea.sflag [#allocation3], %s337
        %s339 = sand.u32 %s36, 1
        %s340 = smul.addr %s339, 8
        %s341 = scalar_lea.vmem [#allocation2], %s340
        // Predicated region
        $region53: #{tpu_custom_call.1} parent=51 // pred_check
          %p342 = pneg %p49
        $region54: #{tpu_custom_call.1} parent=51 // pred_check_branch
          %344 = sbr.rel (%p342) target = $region56
        $region55: #{tpu_custom_call.1} parent=51 // pred_region
          %345 = dma.done %s338, 128
        $region56: #{tpu_custom_call.1} parent=51 // pred_fallthru
          _
        // Predicated region
        $region57: #{tpu_custom_call.1} parent=51 // pred_check
          %p346 = pneg %p70
        $region58: #{tpu_custom_call.1} parent=51 // pred_check_branch
          %348 = sbr.rel (%p346) target = $region60
        $region59: #{tpu_custom_call.1} parent=51 // pred_region
          %349 = dma.done [#allocation6], 512
        $region60: #{tpu_custom_call.1} parent=51 // pred_fallthru
          _
        // Predicated region
        $region61: #{tpu_custom_call.1} parent=51 // pred_check
          %p350 = pneg %p91
        $region62: #{tpu_custom_call.1} parent=51 // pred_check_branch
          %352 = sbr.rel (%p350) target = $region64
        $region63: #{tpu_custom_call.1} parent=51 // pred_region
          %353 = dma.done [#allocation6], 2048
        $region64: #{tpu_custom_call.1} parent=51 // pred_fallthru
          _
        // Predicated region
        $region65: #{tpu_custom_call.1} parent=51 // pred_check
          %p354 = pneg %p133
        $region66: #{tpu_custom_call.1} parent=51 // pred_check_branch
          %356 = sbr.rel (%p354) target = $region68
        $region67: #{tpu_custom_call.1} parent=51 // pred_region
          %357 = dma.done [#allocation9], 2048
        $region68: #{tpu_custom_call.1} parent=51 // pred_fallthru
          _
        // Predicated region
        $region69: #{tpu_custom_call.1} parent=51 // pred_check
          %p358 = pneg %p154
        $region70: #{tpu_custom_call.1} parent=51 // pred_check_branch
          %360 = sbr.rel (%p358) target = $region72
        $region71: #{tpu_custom_call.1} parent=51 // pred_region
          %361 = dma.done [#allocation9], 512
        $region72: #{tpu_custom_call.1} parent=51 // pred_fallthru
          _
        // Predicated region
        $region73: #{tpu_custom_call.1} parent=51 // pred_check
          %p362 = pneg %p196
        $region74: #{tpu_custom_call.1} parent=51 // pred_check_branch
          %364 = sbr.rel (%p362) target = $region76
        $region75: #{tpu_custom_call.1} parent=51 // pred_region
          %365 = dma.done [#allocation12], 2048
        $region76: #{tpu_custom_call.1} parent=51 // pred_fallthru
          _
        %s366 = sand.u32 %s36, 1
        %s367 = scalar_lea.sflag [#allocation3], %s366
        %s368 = sand.u32 %s36, 1
        %s369 = smul.addr %s368, 8
        %s370 = scalar_lea.vmem [#allocation2], %s369
        %p371 = pneg %p49
        %p372 = pneg %p46
        %p373 = pneg %p70
        %p374 = pneg %p67
        %p375 = pneg %p91
        %p376 = pneg %p88
        %p377 = pneg %p112
        %p378 = pneg %p109
        %p379 = pneg %p133
        %p380 = pneg %p130
        %p381 = pneg %p154
        %p382 = pneg %p151
        %p383 = pneg %p175
        %p384 = pneg %p172
        %p385 = pneg %p196
        %p386 = pneg %p193
        %p387 = pneg %p222
        %p388 = pneg %p219
        %s389 = sand.u32 %s209, 1
        %s390 = scalar_lea.sflag [#allocation4], %s389
        %s391 = sand.u32 %s209, 1
        %s392 = smul.addr %s391, 8
        %s393 = scalar_lea.vmem [#allocation13], %s392
        %v394 = vld [vmem:[%s341] sm:$0xff]
        %v395 = vld [vmem:[#allocation5] sm:$0xff]
        %v396 = vld [vmem:[#allocation5 + $0x8] sm:$0xff]
        %v397 = vld [vmem:[#allocation5 + $0x10] sm:$0xff]
        %v398 = vld [vmem:[#allocation5 + $0x18] sm:$0xff]
        %vm399 = vcmask 261120
        %v401 = vsel %vm399, %v394, 0
        %403 = vmatprep.subr.mxu0 0.0
        %404 = vmatpush1.msra.mxu0 %v395
        %405 = vmatprep.subr.mxu0 0.0
        %406 = vmatpush1.msra.mxu0 %v396
        %407 = vmatprep.subr.mxu0 0.0
        %408 = vmatpush1.msra.mxu0 %v397
        %409 = vmatprep.subr.mxu0 0.0
        %410 = vmatpush1.msra.mxu0 %v398
        %411 = vmatprep.subr.mxu0 0.0
        %412 = vmatpush1.msra.mxu0 0.0
        %413 = vmatprep.subr.mxu0 0.0
        %414 = vmatpush1.msra.mxu0 0.0
        %415 = vmatprep.subr.mxu0 0.0
        %416 = vmatpush1.msra.mxu0 0.0
        %417 = vmatprep.subr.mxu0 0.0
        %418 = vmatpush1.msra.mxu0 0.0
        %419 = vmatprep.subr.mxu0 0.0
        %420 = vmatpush1.msra.mxu0 0.0
        %421 = vmatprep.subr.mxu0 0.0
        %422 = vmatpush1.msra.mxu0 0.0
        %423 = vmatprep.subr.mxu0 0.0
        %424 = vmatpush1.msra.mxu0 0.0
        %425 = vmatprep.subr.mxu0 0.0
        %426 = vmatpush1.msra.mxu0 0.0
        %427 = vmatprep.subr.mxu0 0.0
        %428 = vmatpush1.msra.mxu0 0.0
        %429 = vmatprep.subr.mxu0 0.0
        %430 = vmatpush1.msra.mxu0 0.0
        %431 = vmatprep.subr.mxu0 0.0
        %432 = vmatpush1.msra.mxu0 0.0
        %433 = vmatprep.subr.mxu0 0.0
        %434 = vmatpush1.msra.mxu0 0.0
        %435 = vmatprep.subr.mxu0 0.0
        %436 = vmatpush1.msra.mxu0 0.0
        %437 = vmatprep.subr.mxu0 0.0
        %438 = vmatpush1.msra.mxu0 0.0
        %439 = vmatprep.subr.mxu0 0.0
        %440 = vmatpush1.msra.mxu0 0.0
        %441 = vmatprep.subr.mxu0 0.0
        %442 = vmatpush1.msra.mxu0 0.0
        %443 = vmatprep.subr.mxu0 0.0
        %444 = vmatpush1.msra.mxu0 0.0
        %445 = vmatprep.subr.mxu0 0.0
        %446 = vmatpush1.msra.mxu0 0.0
        %447 = vmatprep.subr.mxu0 0.0
        %448 = vmatpush1.msra.mxu0 0.0
        %449 = vmatprep.subr.mxu0 0.0
        %450 = vmatpush1.msra.mxu0 0.0
        %451 = vmatprep.subr.mxu0 0.0
        %452 = vmatpush1.msra.mxu0 0.0
        %453 = vmatprep.subr.mxu0 0.0
        %454 = vmatpush1.msra.mxu0 0.0
        %455 = vmatprep.subr.mxu0 0.0
        %456 = vmatpush1.msra.mxu0 0.0
        %457 = vmatprep.subr.mxu0 0.0
        %458 = vmatpush1.msra.mxu0 0.0
        %459 = vmatprep.subr.mxu0 0.0
        %460 = vmatpush1.msra.mxu0 0.0
        %461 = vmatprep.subr.mxu0 0.0
        %462 = vmatpush1.msra.mxu0 0.0
        %463 = vmatprep.subr.mxu0 0.0
        %464 = vmatpush1.msra.mxu0 0.0
        %465 = vmatprep.subr.mxu0 0.0
        %466 = vmatpush1.msra.mxu0 0.0
        %467 = vmatprep.mubr.f32.mxu0 0.0
        %468 = vmatmul.mubr.f32.gmra.mrb[0].mxu0 %v401
        %v469 = vpop.f32.mrb[0].mxu0
        %v470 = vadd.f32 0.0, %v469
        %v471 = vpop.f32.mrb[0].mxu0
        %472 = vdwg.mxu0
        %v473 = vld [vmem:[#allocation7] sm:$0xff]
        %v474 = vld [vmem:[#allocation7 + $0x8] sm:$0xff]
        %v475 = vld [vmem:[#allocation7 + $0x10] sm:$0xff]
        %v476 = vld [vmem:[#allocation7 + $0x18] sm:$0xff]
        %v477 = vld [vmem:[#allocation7 + $0x20] sm:$0xff]
        %v478 = vld [vmem:[#allocation7 + $0x28] sm:$0xff]
        %v479 = vld [vmem:[#allocation7 + $0x30] sm:$0xff]
        %v480 = vld [vmem:[#allocation7 + $0x38] sm:$0xff]
        %v481 = vld [vmem:[#allocation7 + $0x40] sm:$0xff]
        %v482 = vld [vmem:[#allocation7 + $0x48] sm:$0xff]
        %v483 = vld [vmem:[#allocation7 + $0x50] sm:$0xff]
        %v484 = vld [vmem:[#allocation7 + $0x58] sm:$0xff]
        %v485 = vld [vmem:[#allocation7 + $0x60] sm:$0xff]
        %v486 = vld [vmem:[#allocation7 + $0x68] sm:$0xff]
        %v487 = vld [vmem:[#allocation7 + $0x70] sm:$0xff]
        %v488 = vld [vmem:[#allocation7 + $0x78] sm:$0xff]
        %v489 = vld [vmem:[%s3] sm:$0x1]
        %v491 = vlaneseq
        %v492 = vshrl.u32 %v491, 7
        %v493 = vsub.s32 0, %v492
        %v494 = vrot.slane %v489, %v493
        %496 = vmatprep.subr.mxu0 0.0
        %497 = vmatpush1.msra.mxu0 %v473
        %498 = vmatprep.subr.mxu0 0.0
        %499 = vmatpush1.msra.mxu0 %v474
        %500 = vmatprep.subr.mxu0 0.0
        %501 = vmatpush1.msra.mxu0 %v475
        %502 = vmatprep.subr.mxu0 0.0
        %503 = vmatpush1.msra.mxu0 %v476
        %504 = vmatprep.subr.mxu0 0.0
        %505 = vmatpush1.msra.mxu0 %v477
        %506 = vmatprep.subr.mxu0 0.0
        %507 = vmatpush1.msra.mxu0 %v478
        %508 = vmatprep.subr.mxu0 0.0
        %509 = vmatpush1.msra.mxu0 %v479
        %510 = vmatprep.subr.mxu0 0.0
        %511 = vmatpush1.msra.mxu0 %v480
        %512 = vmatprep.subr.mxu0 0.0
        %513 = vmatpush1.msra.mxu0 %v481
        %514 = vmatprep.subr.mxu0 0.0
        %515 = vmatpush1.msra.mxu0 %v482
        %516 = vmatprep.subr.mxu0 0.0
        %517 = vmatpush1.msra.mxu0 %v483
        %518 = vmatprep.subr.mxu0 0.0
        %519 = vmatpush1.msra.mxu0 %v484
        %520 = vmatprep.subr.mxu0 0.0
        %521 = vmatpush1.msra.mxu0 %v485
        %522 = vmatprep.subr.mxu0 0.0
        %523 = vmatpush1.msra.mxu0 %v486
        %524 = vmatprep.subr.mxu0 0.0
        %525 = vmatpush1.msra.mxu0 %v487
        %526 = vmatprep.subr.mxu0 0.0
        %527 = vmatpush1.msra.mxu0 %v488
        %528 = vmatprep.subr.mxu0 0.0
        %529 = vmatpush1.msra.mxu0 0.0
        %530 = vmatprep.subr.mxu0 0.0
        %531 = vmatpush1.msra.mxu0 0.0
        %532 = vmatprep.subr.mxu0 0.0
        %533 = vmatpush1.msra.mxu0 0.0
        %534 = vmatprep.subr.mxu0 0.0
        %535 = vmatpush1.msra.mxu0 0.0
        %536 = vmatprep.subr.mxu0 0.0
        %537 = vmatpush1.msra.mxu0 0.0
        %538 = vmatprep.subr.mxu0 0.0
        %539 = vmatpush1.msra.mxu0 0.0
        %540 = vmatprep.subr.mxu0 0.0
        %541 = vmatpush1.msra.mxu0 0.0
        %542 = vmatprep.subr.mxu0 0.0
        %543 = vmatpush1.msra.mxu0 0.0
        %544 = vmatprep.subr.mxu0 0.0
        %545 = vmatpush1.msra.mxu0 0.0
        %546 = vmatprep.subr.mxu0 0.0
        %547 = vmatpush1.msra.mxu0 0.0
        %548 = vmatprep.subr.mxu0 0.0
        %549 = vmatpush1.msra.mxu0 0.0
        %550 = vmatprep.subr.mxu0 0.0
        %551 = vmatpush1.msra.mxu0 0.0
        %552 = vmatprep.subr.mxu0 0.0
        %553 = vmatpush1.msra.mxu0 0.0
        %554 = vmatprep.subr.mxu0 0.0
        %555 = vmatpush1.msra.mxu0 0.0
        %556 = vmatprep.subr.mxu0 0.0
        %557 = vmatpush1.msra.mxu0 0.0
        %558 = vmatprep.subr.mxu0 0.0
        %559 = vmatpush1.msra.mxu0 0.0
        %560 = vmatprep.mubr.f32.mxu0 0.0
        %561 = vmatmul.mubr.f32.gmra.mrb[0].mxu0 %v470
        %v562 = vpop.f32.mrb[0].mxu0
        %v563 = vadd.f32 %v494, %v562
        %v564 = vpop.f32.mrb[0].mxu0
        %565 = vdwg.mxu0
        %v566 = vmax.f32 %v563, 0.0
        %vm567 = vcmp.ne.f32.partialorder %v563, %v563
        %v568 = vadd.f32 %v563, 0.0
        %v569 = vand.u32 2147483647, %v563
        %v570 = vsub.f32 0.0, %v569
        %v571 = vmul.f32 %v570, 1.442695
        %v572 = vpow.pop %v571
        %v573 = vadd.f32 %v572, 1.0
        %v574 = vlog2.pop %v573
        %v575 = vmul.f32 %v574, 0.6931472
        %v576 = vmul.f32 -0.5, %v572
        %v577 = vadd.f32 %v576, 1.0
        %v578 = vmul.f32 %v577, %v572
        %v579 = vand.u32 2147483647, %v572
        %vm580 = vcmp.lt.f32.partialorder %v579, 0.0004427343
        %v581 = vsel %vm580, %v578, %v575
        %v582 = vadd.f32 %v566, %v581
        %v583 = vsel %vm567, %v568, %v582
        %v584 = vld [vmem:[#allocation8] sm:$0xff]
        %v585 = vld [vmem:[#allocation8 + $0x8] sm:$0xff]
        %v586 = vld [vmem:[#allocation8 + $0x10] sm:$0xff]
        %v587 = vld [vmem:[#allocation8 + $0x18] sm:$0xff]
        %v588 = vld [vmem:[#allocation8 + $0x20] sm:$0xff]
        %v589 = vld [vmem:[#allocation8 + $0x28] sm:$0xff]
        %v590 = vld [vmem:[#allocation8 + $0x30] sm:$0xff]
        %v591 = vld [vmem:[#allocation8 + $0x38] sm:$0xff]
        %v592 = vld [vmem:[#allocation8 + $0x40] sm:$0xff]
        %v593 = vld [vmem:[#allocation8 + $0x48] sm:$0xff]
        %v594 = vld [vmem:[#allocation8 + $0x50] sm:$0xff]
        %v595 = vld [vmem:[#allocation8 + $0x58] sm:$0xff]
        %v596 = vld [vmem:[#allocation8 + $0x60] sm:$0xff]
        %v597 = vld [vmem:[#allocation8 + $0x68] sm:$0xff]
        %v598 = vld [vmem:[#allocation8 + $0x70] sm:$0xff]
        %v599 = vld [vmem:[#allocation8 + $0x78] sm:$0xff]
        %v600 = vld [vmem:[#allocation10] sm:$0xff]
        %v601 = vld [vmem:[#allocation10 + $0x8] sm:$0xff]
        %v602 = vld [vmem:[#allocation10 + $0x10] sm:$0xff]
        %v603 = vld [vmem:[#allocation10 + $0x18] sm:$0xff]
        %604 = vmatprep.subr.mxu0 0.0
        %605 = vmatpush1.msra.mxu0 %v600
        %606 = vmatprep.subr.mxu0 0.0
        %607 = vmatpush1.msra.mxu0 %v601
        %608 = vmatprep.subr.mxu0 0.0
        %609 = vmatpush1.msra.mxu0 %v602
        %610 = vmatprep.subr.mxu0 0.0
        %611 = vmatpush1.msra.mxu0 %v603
        %612 = vmatprep.subr.mxu0 0.0
        %613 = vmatpush1.msra.mxu0 0.0
        %614 = vmatprep.subr.mxu0 0.0
        %615 = vmatpush1.msra.mxu0 0.0
        %616 = vmatprep.subr.mxu0 0.0
        %617 = vmatpush1.msra.mxu0 0.0
        %618 = vmatprep.subr.mxu0 0.0
        %619 = vmatpush1.msra.mxu0 0.0
        %620 = vmatprep.subr.mxu0 0.0
        %621 = vmatpush1.msra.mxu0 0.0
        %622 = vmatprep.subr.mxu0 0.0
        %623 = vmatpush1.msra.mxu0 0.0
        %624 = vmatprep.subr.mxu0 0.0
        %625 = vmatpush1.msra.mxu0 0.0
        %626 = vmatprep.subr.mxu0 0.0
        %627 = vmatpush1.msra.mxu0 0.0
        %628 = vmatprep.subr.mxu0 0.0
        %629 = vmatpush1.msra.mxu0 0.0
        %630 = vmatprep.subr.mxu0 0.0
        %631 = vmatpush1.msra.mxu0 0.0
        %632 = vmatprep.subr.mxu0 0.0
        %633 = vmatpush1.msra.mxu0 0.0
        %634 = vmatprep.subr.mxu0 0.0
        %635 = vmatpush1.msra.mxu0 0.0
        %636 = vmatprep.subr.mxu0 0.0
        %637 = vmatpush1.msra.mxu0 0.0
        %638 = vmatprep.subr.mxu0 0.0
        %639 = vmatpush1.msra.mxu0 0.0
        %640 = vmatprep.subr.mxu0 0.0
        %641 = vmatpush1.msra.mxu0 0.0
        %642 = vmatprep.subr.mxu0 0.0
        %643 = vmatpush1.msra.mxu0 0.0
        %644 = vmatprep.subr.mxu0 0.0
        %645 = vmatpush1.msra.mxu0 0.0
        %646 = vmatprep.subr.mxu0 0.0
        %647 = vmatpush1.msra.mxu0 0.0
        %648 = vmatprep.subr.mxu0 0.0
        %649 = vmatpush1.msra.mxu0 0.0
        %650 = vmatprep.subr.mxu0 0.0
        %651 = vmatpush1.msra.mxu0 0.0
        %652 = vmatprep.subr.mxu0 0.0
        %653 = vmatpush1.msra.mxu0 0.0
        %654 = vmatprep.subr.mxu0 0.0
        %655 = vmatpush1.msra.mxu0 0.0
        %656 = vmatprep.subr.mxu0 0.0
        %657 = vmatpush1.msra.mxu0 0.0
        %658 = vmatprep.subr.mxu0 0.0
        %659 = vmatpush1.msra.mxu0 0.0
        %660 = vmatprep.subr.mxu0 0.0
        %661 = vmatpush1.msra.mxu0 0.0
        %662 = vmatprep.subr.mxu0 0.0
        %663 = vmatpush1.msra.mxu0 0.0
        %664 = vmatprep.subr.mxu0 0.0
        %665 = vmatpush1.msra.mxu0 0.0
        %666 = vmatprep.subr.mxu0 0.0
        %667 = vmatpush1.msra.mxu0 0.0
        %668 = vmatprep.mubr.f32.mxu0 0.0
        %669 = vmatmul.mubr.f32.gmra.mrb[0].mxu0 %v401
        %v670 = vpop.f32.mrb[0].mxu0
        %v671 = vadd.f32 0.0, %v670
        %v672 = vpop.f32.mrb[0].mxu0
        %673 = vdwg.mxu0
        %674 = vmatprep.subr.mxu0 0.0
        %675 = vmatpush1.msra.mxu0 %v584
        %676 = vmatprep.subr.mxu0 0.0
        %677 = vmatpush1.msra.mxu0 %v585
        %678 = vmatprep.subr.mxu0 0.0
        %679 = vmatpush1.msra.mxu0 %v586
        %680 = vmatprep.subr.mxu0 0.0
        %681 = vmatpush1.msra.mxu0 %v587
        %682 = vmatprep.subr.mxu0 0.0
        %683 = vmatpush1.msra.mxu0 %v588
        %684 = vmatprep.subr.mxu0 0.0
        %685 = vmatpush1.msra.mxu0 %v589
        %686 = vmatprep.subr.mxu0 0.0
        %687 = vmatpush1.msra.mxu0 %v590
        %688 = vmatprep.subr.mxu0 0.0
        %689 = vmatpush1.msra.mxu0 %v591
        %690 = vmatprep.subr.mxu0 0.0
        %691 = vmatpush1.msra.mxu0 %v592
        %692 = vmatprep.subr.mxu0 0.0
        %693 = vmatpush1.msra.mxu0 %v593
        %694 = vmatprep.subr.mxu0 0.0
        %695 = vmatpush1.msra.mxu0 %v594
        %696 = vmatprep.subr.mxu0 0.0
        %697 = vmatpush1.msra.mxu0 %v595
        %698 = vmatprep.subr.mxu0 0.0
        %699 = vmatpush1.msra.mxu0 %v596
        %700 = vmatprep.subr.mxu0 0.0
        %701 = vmatpush1.msra.mxu0 %v597
        %702 = vmatprep.subr.mxu0 0.0
        %703 = vmatpush1.msra.mxu0 %v598
        %704 = vmatprep.subr.mxu0 0.0
        %705 = vmatpush1.msra.mxu0 %v599
        %706 = vmatprep.subr.mxu0 0.0
        %707 = vmatpush1.msra.mxu0 0.0
        %708 = vmatprep.subr.mxu0 0.0
        %709 = vmatpush1.msra.mxu0 0.0
        %710 = vmatprep.subr.mxu0 0.0
        %711 = vmatpush1.msra.mxu0 0.0
        %712 = vmatprep.subr.mxu0 0.0
        %713 = vmatpush1.msra.mxu0 0.0
        %714 = vmatprep.subr.mxu0 0.0
        %715 = vmatpush1.msra.mxu0 0.0
        %716 = vmatprep.subr.mxu0 0.0
        %717 = vmatpush1.msra.mxu0 0.0
        %718 = vmatprep.subr.mxu0 0.0
        %719 = vmatpush1.msra.mxu0 0.0
        %720 = vmatprep.subr.mxu0 0.0
        %721 = vmatpush1.msra.mxu0 0.0
        %722 = vmatprep.subr.mxu0 0.0
        %723 = vmatpush1.msra.mxu0 0.0
        %724 = vmatprep.subr.mxu0 0.0
        %725 = vmatpush1.msra.mxu0 0.0
        %726 = vmatprep.subr.mxu0 0.0
        %727 = vmatpush1.msra.mxu0 0.0
        %728 = vmatprep.subr.mxu0 0.0
        %729 = vmatpush1.msra.mxu0 0.0
        %730 = vmatprep.subr.mxu0 0.0
        %731 = vmatpush1.msra.mxu0 0.0
        %732 = vmatprep.subr.mxu0 0.0
        %733 = vmatpush1.msra.mxu0 0.0
        %734 = vmatprep.subr.mxu0 0.0
        %735 = vmatpush1.msra.mxu0 0.0
        %736 = vmatprep.subr.mxu0 0.0
        %737 = vmatpush1.msra.mxu0 0.0
        %738 = vmatprep.mubr.f32.mxu0 0.0
        %739 = vmatmul.mubr.f32.gmra.mrb[0].mxu0 %v583
        %v740 = vpop.f32.mrb[0].mxu0
        %v741 = vadd.f32 %v671, %v740
        %v742 = vpop.f32.mrb[0].mxu0
        %743 = vdwg.mxu0
        %v744 = vld [vmem:[%s6] sm:$0x1]
        %v746 = vlaneseq
        %v747 = vshrl.u32 %v746, 7
        %v748 = vsub.s32 0, %v747
        %v749 = vrot.slane %v744, %v748
        %v751 = vadd.f32 %v741, %v749
        %v752 = vld [vmem:[#allocation11] sm:$0xff]
        %v753 = vld [vmem:[#allocation11 + $0x8] sm:$0xff]
        %v754 = vld [vmem:[#allocation11 + $0x10] sm:$0xff]
        %v755 = vld [vmem:[#allocation11 + $0x18] sm:$0xff]
        %v756 = vld [vmem:[#allocation11 + $0x20] sm:$0xff]
        %v757 = vld [vmem:[#allocation11 + $0x28] sm:$0xff]
        %v758 = vld [vmem:[#allocation11 + $0x30] sm:$0xff]
        %v759 = vld [vmem:[#allocation11 + $0x38] sm:$0xff]
        %v760 = vld [vmem:[#allocation11 + $0x40] sm:$0xff]
        %v761 = vld [vmem:[#allocation11 + $0x48] sm:$0xff]
        %v762 = vld [vmem:[#allocation11 + $0x50] sm:$0xff]
        %v763 = vld [vmem:[#allocation11 + $0x58] sm:$0xff]
        %v764 = vld [vmem:[#allocation11 + $0x60] sm:$0xff]
        %v765 = vld [vmem:[#allocation11 + $0x68] sm:$0xff]
        %v766 = vld [vmem:[#allocation11 + $0x70] sm:$0xff]
        %v767 = vld [vmem:[#allocation11 + $0x78] sm:$0xff]
        %768 = vmatprep.subr.mxu0 0.0
        %769 = vmatpush1.msra.mxu0 %v752
        %770 = vmatprep.subr.mxu0 0.0
        %771 = vmatpush1.msra.mxu0 %v753
        %772 = vmatprep.subr.mxu0 0.0
        %773 = vmatpush1.msra.mxu0 %v754
        %774 = vmatprep.subr.mxu0 0.0
        %775 = vmatpush1.msra.mxu0 %v755
        %776 = vmatprep.subr.mxu0 0.0
        %777 = vmatpush1.msra.mxu0 %v756
        %778 = vmatprep.subr.mxu0 0.0
        %779 = vmatpush1.msra.mxu0 %v757
        %780 = vmatprep.subr.mxu0 0.0
        %781 = vmatpush1.msra.mxu0 %v758
        %782 = vmatprep.subr.mxu0 0.0
        %783 = vmatpush1.msra.mxu0 %v759
        %784 = vmatprep.subr.mxu0 0.0
        %785 = vmatpush1.msra.mxu0 %v760
        %786 = vmatprep.subr.mxu0 0.0
        %787 = vmatpush1.msra.mxu0 %v761
        %788 = vmatprep.subr.mxu0 0.0
        %789 = vmatpush1.msra.mxu0 %v762
        %790 = vmatprep.subr.mxu0 0.0
        %791 = vmatpush1.msra.mxu0 %v763
        %792 = vmatprep.subr.mxu0 0.0
        %793 = vmatpush1.msra.mxu0 %v764
        %794 = vmatprep.subr.mxu0 0.0
        %795 = vmatpush1.msra.mxu0 %v765
        %796 = vmatprep.subr.mxu0 0.0
        %797 = vmatpush1.msra.mxu0 %v766
        %798 = vmatprep.subr.mxu0 0.0
        %799 = vmatpush1.msra.mxu0 %v767
        %800 = vmatprep.subr.mxu0 0.0
        %801 = vmatpush1.msra.mxu0 0.0
        %802 = vmatprep.subr.mxu0 0.0
        %803 = vmatpush1.msra.mxu0 0.0
        %804 = vmatprep.subr.mxu0 0.0
        %805 = vmatpush1.msra.mxu0 0.0
        %806 = vmatprep.subr.mxu0 0.0
        %807 = vmatpush1.msra.mxu0 0.0
        %808 = vmatprep.subr.mxu0 0.0
        %809 = vmatpush1.msra.mxu0 0.0
        %810 = vmatprep.subr.mxu0 0.0
        %811 = vmatpush1.msra.mxu0 0.0
        %812 = vmatprep.subr.mxu0 0.0
        %813 = vmatpush1.msra.mxu0 0.0
        %814 = vmatprep.subr.mxu0 0.0
        %815 = vmatpush1.msra.mxu0 0.0
        %816 = vmatprep.subr.mxu0 0.0
        %817 = vmatpush1.msra.mxu0 0.0
        %818 = vmatprep.subr.mxu0 0.0
        %819 = vmatpush1.msra.mxu0 0.0
        %820 = vmatprep.subr.mxu0 0.0
        %821 = vmatpush1.msra.mxu0 0.0
        %822 = vmatprep.subr.mxu0 0.0
        %823 = vmatpush1.msra.mxu0 0.0
        %824 = vmatprep.subr.mxu0 0.0
        %825 = vmatpush1.msra.mxu0 0.0
        %826 = vmatprep.subr.mxu0 0.0
        %827 = vmatpush1.msra.mxu0 0.0
        %828 = vmatprep.subr.mxu0 0.0
        %829 = vmatpush1.msra.mxu0 0.0
        %830 = vmatprep.subr.mxu0 0.0
        %831 = vmatpush1.msra.mxu0 0.0
        %832 = vmatprep.mubr.f32.mxu0 0.0
        %833 = vmatmul.mubr.f32.gmra.mrb[0].mxu0 %v751
        %v834 = vpop.f32.mrb[0].mxu0
        %v835 = vadd.f32 0.0, %v834
        %v836 = vpop.f32.mrb[0].mxu0
        %837 = vdwg.mxu0
        %839 = vrot.lane.b32.xlu0 %v835, 96
        %v840 = vpop.permute.xlu0 %839
        %v842 = vadd.f32 %v835, %v840
        %v843 = vmul.f32 %v842, 0.5
        %845 = vrot.lane.b32.xlu0 %v843, 96
        %v846 = vpop.permute.xlu0 %845
        %v848 = vmax.f32 %v843, %v846
        %849 = vrot.lane.b32.xlu0 %v843, 64
        %v850 = vpop.permute.xlu0 %849
        %v852 = vmax.f32 %v848, %v850
        %853 = vrot.lane.b32.xlu0 %v843, 32
        %v854 = vpop.permute.xlu0 %853
        %v856 = vmax.f32 %v852, %v854
        %857 = vst.msk [vmem:[%s393] sm:$0xff] %vm399, %v856
        %s858 = sand.u32 %s209, 1
        %s859 = scalar_lea.sflag [#allocation4], %s858
        %s860 = sand.u32 %s209, 1
        %s861 = smul.addr %s860, 8
        %s862 = scalar_lea.vmem [#allocation13], %s861
        // Predicated region
        $region77: #{tpu_custom_call.1} parent=51 // pred_check
          %p863 = pneg %p219
        $region78: #{tpu_custom_call.1} parent=51 // pred_check_branch
          %865 = sbr.rel (%p863) target = $region80
        $region79: #{tpu_custom_call.1} parent=51 // pred_region
          %s867 = ssub.s32 128, 128
          %868 = vsyncadd %s859, %s867
          %s869 = smul.addr %s28, 128
          %s870 = scalar_lea.hbm %s8, %s869
          %s872 = sshll.u32 %s862, 4
          %s873 = int_to_ptr.vmem [resolvable:$true] %s872
          %875 = dma.vmem_to_hbm [thread:$0]  %s873, 128, %s870, %s859
        $region80: #{tpu_custom_call.1} parent=51 // pred_fallthru
          _
      $region52: #{tpu_custom_call.1} parent=5 // pred_fallthru
        _
      %p876 = scmp.le.s32.totalorder 2, %s23
      // Predicated region
      $region81: #{tpu_custom_call.1} parent=5 // pred_check
        %p877 = pneg %p876
      $region82: #{tpu_custom_call.1} parent=5 // pred_check_branch
        %879 = sbr.rel (%p877) target = $region84
      $region83: #{tpu_custom_call.1} parent=5 // pred_region
        %s880 = ssub.s32 %s23, 2
        // Predicated region
        $region85: #{tpu_custom_call.1} parent=83 // pred_check
          %p881 = pneg %p225
        $region86: #{tpu_custom_call.1} parent=83 // pred_check_branch
          %883 = sbr.rel (%p881) target = $region88
        $region87: #{tpu_custom_call.1} parent=83 // pred_region
          %s884 = sand.u32 %s210, 1
          %s885 = scalar_lea.sflag [#allocation4], %s884
          %s886 = sand.u32 %s210, 1
          %s887 = smul.addr %s886, 8
          %s888 = scalar_lea.vmem [#allocation13], %s887
          %889 = dma.done %s885, 128
        $region88: #{tpu_custom_call.1} parent=83 // pred_fallthru
          _
      $region84: #{tpu_custom_call.1} parent=5 // pred_fallthru
        _
    $region6: #{tpu_custom_call.1} parent=1 // loop_footer
      %s27 = sadd.s32 1, %s23
    $region7: #{tpu_custom_call.1} parent=1 // loop_footer_branch
      %22 = sbr.rel target = $region3
    $region8: #{tpu_custom_call.1} parent=1 // loop_exit
      _
    %890 = vsyncpa [#allocation3], 1
    %s891 = scalar_lea.sflag [#allocation3], 1
    %892 = vsyncpa %s891, 1
    %893 = vsyncpa [#allocation6], 1
    %894 = vsyncpa [#allocation9], 1
    %895 = vsyncpa [#allocation12], 1
    %896 = vsyncpa [#allocation4], 1
    %s897 = scalar_lea.sflag [#allocation4], 1
    %898 = vsyncpa %s897, 1

</llo_original>
